<compile_context>
chip_gen: v7x
topology: tpu7x:2x2x1
jax: 0.10.0
libtpu: 0.0.40
codegen_flags: <defaults>
</compile_context>

<pallas_src>
import jax
import jax.numpy as jnp
from jax import lax
from jax.experimental import pallas as pl
from jax.experimental.pallas import tpu as pltpu

_LN_HALF = -0.6931471805599453           # ln(0.5)
_TINY = float(jnp.finfo(jnp.float32).tiny)


def _round_up(x, m):
    return ((x + m - 1) // m) * m


def _make_jsd_kernel(n, d, block_rows, block_d, mask_rows, mask_cols):
    n_sub_blocks = block_rows // 8
    n_lane_blocks = block_d // 128

    def kernel(p_ref, q_ref, out_ref):
        # out_ref is this row-tile's private (8, 128) partial-sum block,
        # resident across the class-dim (reduction) grid axis.
        @pl.when(pl.program_id(1) == 0)
        def _():
            out_ref[...] = jnp.zeros_like(out_ref)

        p = p_ref[...].astype(jnp.float32)
        q = q_ref[...].astype(jnp.float32)
        s = p + q  # 2*m

        # Clamped logs: exact 0 contribution at p==0 (0 * log(tiny) == 0),
        # no log(0) NaNs, no compare+select per term.
        term = (p * jnp.log(jnp.maximum(p, _TINY))
                + q * jnp.log(jnp.maximum(q, _TINY))
                - s * (jnp.log(jnp.maximum(s, _TINY)) + _LN_HALF))

        # Ragged boundary blocks hold undefined data -> mask on iota vs the
        # true n/d (static at trace time).  Generated only when needed.
        if mask_rows or mask_cols:
            valid = None
            if mask_rows:
                rows = (lax.broadcasted_iota(jnp.int32, (block_rows, block_d), 0)
                        + pl.program_id(0) * block_rows)
                valid = rows < n
            if mask_cols:
                cols = (lax.broadcasted_iota(jnp.int32, (block_rows, block_d), 1)
                        + pl.program_id(1) * block_d)
                cmask = cols < d
                valid = cmask if valid is None else (valid & cmask)
            term = jnp.where(valid, term, 0.0)

        # Lane/sublane-aligned (8, 128) accumulation — pure VALU vreg adds:
        #   1) fold row groups of 8 (major-dim reshape is layout-free),
        #   2) fold 128-lane blocks with aligned static slices.
        t = term.reshape(n_sub_blocks, 8, block_d).sum(axis=0)      # (8, block_d)
        acc = t[:, 0:128]
        for cb in range(1, n_lane_blocks):
            acc = acc + t[:, cb * 128:(cb + 1) * 128]
        out_ref[...] += acc

    return kernel


def jsd(p, q):
    """Jensen-Shannon divergence matching the PyTorch JSD module (scalar)."""
    d = p.shape[-1]
    p2 = p.reshape(-1, d)
    q2 = q.reshape(-1, d)
    n = p2.shape[0]
    itemsize = jnp.dtype(p2.dtype).itemsize

    # dtype-native sublane packing: f32 -> 8, bf16 -> 16, int8/fp8 -> 32.
    sublane = 8 * max(1, 4 // itemsize)

    # Budget the tile by its in-kernel f32 working footprint (upcast inside the
    # kernel), independent of the input dtype.  ~4 MiB f32 per input tile.
    tile_elems = (4 * 1024 * 1024) // 4

    # Class-dim block: lane-dense 128-multiple; cap keeps the lane-block fold
    # short and relies on the D grid axis for very large class dims.
    block_d = min(_round_up(d, 128), 2048)

    block_rows = ((tile_elems // block_d) // sublane) * sublane
    block_rows = max(sublane, block_rows)
    block_rows = min(block_rows, _round_up(n, sublane))
    # Guarantee >= 2 row tiles where possible so the "parallel" axis can shard
    # across both TensorCores on v7x (no effect on single-TC v5e/v6e).
    if n > sublane:
        block_rows = min(block_rows, _round_up(pl.cdiv(n, 2), sublane))

    n_row_tiles = pl.cdiv(n, block_rows)
    n_d_tiles = pl.cdiv(d, block_d)

    mask_rows = (n % block_rows) != 0
    mask_cols = (d % block_d) != 0

    # VMEM limit sized to actual need: 2 inputs x 2 pipeline buffers + output
    # double buffer + margin for in-kernel f32 scratch; clamped to 64 MiB / HW.
    in_tile_bytes = block_rows * block_d * itemsize
    vmem_needed = 4 * in_tile_bytes + 2 * (8 * 128 * 4) + (8 << 20)
    try:
        vmem_cap = int(pltpu.get_tpu_info().vmem_capacity_bytes)
    except Exception:
        vmem_cap = 64 << 20
    vmem_limit = max(16 << 20, min(vmem_needed, 64 << 20, vmem_cap))

    kernel = _make_jsd_kernel(n, d, block_rows, block_d, mask_rows, mask_cols)

    partials = pl.pallas_call(
        kernel,
        out_shape=jax.ShapeDtypeStruct((n_row_tiles * 8, 128), jnp.float32),
        grid_spec=pltpu.PrefetchScalarGridSpec(
            num_scalar_prefetch=0,
            grid=(n_row_tiles, n_d_tiles),
            in_specs=[
                pl.BlockSpec((block_rows, block_d), lambda i, j: (i, j)),
                pl.BlockSpec((block_rows, block_d), lambda i, j: (i, j)),
            ],
            out_specs=pl.BlockSpec((8, 128), lambda i, j: (i, 0)),
        ),
        compiler_params=pltpu.CompilerParams(
            dimension_semantics=("parallel", "arbitrary"),
            vmem_limit_bytes=int(vmem_limit),
        ),
    )(p2, q2)

    # Every lane/sublane of a row-tile's (8,128) block holds a partial sum of
    # that tile's contribution; a single dense sum finishes the reduction.
    return (0.5 * jnp.sum(partials) / n).astype(jnp.float32)


def _jsd_reference(p, q):
    """Pure-JAX reference matching the PyTorch module exactly."""
    d = p.shape[-1]
    p2 = p.reshape(-1, d).astype(jnp.float32)
    q2 = q.reshape(-1, d).astype(jnp.float32)
    n = p2.shape[0]
    log_m = jnp.log(0.5 * (p2 + q2))
    kl_pm = jnp.sum(p2 * (jnp.log(p2) - log_m)) / n
    kl_qm = jnp.sum(q2 * (jnp.log(q2) - log_m)) / n
    return 0.5 * (kl_pm + kl_qm)


if __name__ == "__main__":
    key = jax.random.PRNGKey(0)
    k1, k2, k3, k4 = jax.random.split(key, 4)

    # Test 1: f32, (batch=4, seq=16, classes=128) -> (64, 128), fully aligned.
    p = jax.nn.softmax(jax.random.normal(k1, (4, 16, 128), jnp.float32), axis=-1)
    q = jax.nn.softmax(jax.random.normal(k2, (4, 16, 128), jnp.float32), axis=-1)
    out = jax.block_until_ready(jsd(p, q))
    ref = _jsd_reference(p, q)
    assert jnp.allclose(out, ref, rtol=1e-4, atol=1e-6), (out, ref)

    # Test 2: ragged row count + class dim not a multiple of 128
    # (exercises in-kernel iota masking, no jnp.pad anywhere).
    p = jax.nn.softmax(jax.random.normal(k3, (3, 7, 96), jnp.float32), axis=-1)
    q = jax.nn.softmax(jax.random.normal(k4, (3, 7, 96), jnp.float32), axis=-1)
    out = jax.block_until_ready(jsd(p, q))
    ref = _jsd_reference(p, q)
    assert jnp.allclose(out, ref, rtol=1e-4, atol=1e-6), (out, ref)

    # Test 3: bf16 pass-through (upcast happens only inside the kernel).
    p = jax.nn.softmax(jax.random.normal(k1, (2, 8, 256), jnp.float32), axis=-1)
    q = jax.nn.softmax(jax.random.normal(k2, (2, 8, 256), jnp.float32), axis=-1)
    p, q = p.astype(jnp.bfloat16), q.astype(jnp.bfloat16)
    out = jax.block_until_ready(jsd(p, q))
    ref = _jsd_reference(p, q)
    assert jnp.allclose(out, ref, rtol=1e-4, atol=1e-6), (out, ref)

    print("KERNEL_OK")
</pallas_src>

<mosaic_0001>
module attributes {stable_mosaic.version = 11 : i64} {
  func.func @kernel(%arg0: i32, %arg1: i32, %arg2: memref<32x128xf32, #tpu.memory_space<vmem>>, %arg3: memref<32x128xf32, #tpu.memory_space<vmem>>, %arg4: memref<8x128xf32, #tpu.memory_space<vmem>>) attributes {dimension_semantics = [#tpu.dimension_semantics<parallel>, #tpu.dimension_semantics<arbitrary>], iteration_bounds = array<i64: 2, 1>, scalar_prefetch = 0 : i64, scratch_operands = 0 : i64, tpu.core_type = #tpu.core_type<tc>, window_params = [{transform_indices = @transform_0, window_bounds = array<i64: 32, 128>}, {transform_indices = @transform_1, window_bounds = array<i64: 32, 128>}, {transform_indices = @transform_2, window_bounds = array<i64: 8, 128>}]} {
    %c0_i32 = arith.constant 0 : i32
    %0 = arith.cmpi eq, %arg1, %c0_i32 : i32
    %1 = arith.extui %0 : i1 to i32
    %c0_i32_0 = arith.constant 0 : i32
    %2 = arith.cmpi ne, %1, %c0_i32_0 : i32
    scf.if %2 {
      %cst_12 = arith.constant 0.000000e+00 : f32
      %27 = vector.broadcast %cst_12 : f32 to vector<8x128xf32>
      %c0_13 = arith.constant 0 : index
      %c0_14 = arith.constant 0 : index
      %28 = vector.load %arg4[%c0_13, %c0_14] : memref<8x128xf32, #tpu.memory_space<vmem>>, vector<8x128xf32>
      tpu.vector_store %arg4[%c0_13, %c0_14], %27 {strides = array<i32>} : memref<8x128xf32, #tpu.memory_space<vmem>>, vector<8x128xf32>,
    } else {
    }
    %c0 = arith.constant 0 : index
    %c0_1 = arith.constant 0 : index
    %3 = vector.load %arg2[%c0, %c0_1] : memref<32x128xf32, #tpu.memory_space<vmem>>, vector<32x128xf32>
    %c0_2 = arith.constant 0 : index
    %c0_3 = arith.constant 0 : index
    %4 = vector.load %arg3[%c0_2, %c0_3] : memref<32x128xf32, #tpu.memory_space<vmem>>, vector<32x128xf32>
    %5 = arith.addf %3, %4 : vector<32x128xf32>
    %cst = arith.constant 1.17549435E-38 : f32
    %6 = vector.broadcast %cst : f32 to vector<32x128xf32>
    %7 = arith.maximumf %3, %6 : vector<32x128xf32>
    %8 = math.log %7 : vector<32x128xf32>
    %9 = arith.mulf %3, %8 : vector<32x128xf32>
    %cst_4 = arith.constant 1.17549435E-38 : f32
    %10 = vector.broadcast %cst_4 : f32 to vector<32x128xf32>
    %11 = arith.maximumf %4, %10 : vector<32x128xf32>
    %12 = math.log %11 : vector<32x128xf32>
    %13 = arith.mulf %4, %12 : vector<32x128xf32>
    %14 = arith.addf %9, %13 : vector<32x128xf32>
    %cst_5 = arith.constant 1.17549435E-38 : f32
    %15 = vector.broadcast %cst_5 : f32 to vector<32x128xf32>
    %16 = arith.maximumf %5, %15 : vector<32x128xf32>
    %17 = math.log %16 : vector<32x128xf32>
    %cst_6 = arith.constant -0.693147182 : f32
    %18 = vector.broadcast %cst_6 : f32 to vector<32x128xf32>
    %19 = arith.addf %17, %18 : vector<32x128xf32>
    %20 = arith.mulf %5, %19 : vector<32x128xf32>
    %21 = arith.subf %14, %20 : vector<32x128xf32>
    %22 = vector.shape_cast %21 : vector<32x128xf32> to vector<4x8x128xf32>
    %cst_7 = arith.constant dense<0.000000e+00> : vector<8x128xf32>
    %23 = vector.multi_reduction <add>, %22, %cst_7 [0] : vector<4x8x128xf32> to vector<8x128xf32>
    %c0_8 = arith.constant 0 : index
    %c0_9 = arith.constant 0 : index
    %24 = vector.load %arg4[%c0_8, %c0_9] : memref<8x128xf32, #tpu.memory_space<vmem>>, vector<8x128xf32>
    %25 = arith.addf %24, %23 : vector<8x128xf32>
    %c0_10 = arith.constant 0 : index
    %c0_11 = arith.constant 0 : index
    %26 = vector.load %arg4[%c0_10, %c0_11] : memref<8x128xf32, #tpu.memory_space<vmem>>, vector<8x128xf32>
    tpu.vector_store %arg4[%c0_10, %c0_11], %25 {strides = array<i32>} : memref<8x128xf32, #tpu.memory_space<vmem>>, vector<8x128xf32>,
    return
  }
  func.func @transform_0(%arg0: i32, %arg1: i32) -> (i32, i32) {
    %c0_i32 = arith.constant 0 : i32
    return %arg0, %arg1 : i32, i32
  }
  func.func @transform_1(%arg0: i32, %arg1: i32) -> (i32, i32) {
    %c0_i32 = arith.constant 0 : i32
    return %arg0, %arg1 : i32, i32
  }
  func.func @transform_2(%arg0: i32, %arg1: i32) -> (i32, i32) {
    %c0_i32 = arith.constant 0 : i32
    %c0_i32_0 = arith.constant 0 : i32
    return %arg0, %c0_i32 : i32, i32
  }
}

</mosaic_0001>

<llo_original>
// kernel: tpu_custom_call.1
$region0: #{tpu_custom_call.1}
  #allocation0 [shape = 'u32[]', space=smem, size = 0x4, offset = 0x4, fixed_abs, tag = 'smem constant byte address 0x4 - core index']
  #allocation1 [shape = 'u32[144,128]{1,0:T(1,128)}', space=vmem, size = 0x12000, scoped, tag = 'internal scratch']
  %s0 = inlined_call_operand.hbm [shape: f32[64,128], index: 0, kind: input, shape index: {}]
  %s1 = inlined_call_operand.hbm [shape: f32[64,128], index: 1, kind: input, shape index: {}]
  %s2 = inlined_call_operand.hbm [shape: f32[16,128], index: 2, kind: output, shape index: {}]
  %s3 = sld [smem:[#allocation0]]
  $region53: #{tpu_custom_call.1} parent=0
    _
  %s5 = ssub.s32 1, %s3
  %s6 = scalar_select 0, %s5, %s3
  $region1: #{tpu_custom_call.1} parent=0
    #allocation2 [shape = 'u8[32768]{0}', space=vmem, size = 0x8000, scoped, tag = 'input window, operand 0']
    #allocation3 [shape = 's32[2]{0}', space=sflag, size = 0x8, scoped, tag = 'scoped memory for tpu_custom_call.1']
    #allocation4 [shape = 's32[2]{0}', space=sflag, size = 0x8, scoped, tag = 'scoped memory for tpu_custom_call.1']
    #allocation5 [shape = 'u8[32768]{0}', space=vmem, size = 0x8000, scoped, tag = 'input window, operand 1']
    #allocation6 [shape = 's32[2]{0}', space=sflag, size = 0x8, scoped, tag = 'scoped memory for tpu_custom_call.1']
    #allocation7 [shape = 'u8[8192]{0}', space=vmem, size = 0x2000, scoped, tag = 'output window, operand 0']
    %7 = vsyncpa [#allocation3], 0
    %s8 = scalar_lea.sflag [#allocation3], 1
    %9 = vsyncpa %s8, 0
    %10 = vsyncpa [#allocation6], 0
    %s11 = scalar_lea.sflag [#allocation6], 1
    %12 = vsyncpa %s11, 0
    %13 = vsyncpa [#allocation4], 0
    %s14 = scalar_lea.sflag [#allocation4], 1
    %15 = vsyncpa %s14, 0
    loop: start=0, step=1, limit=4
    $region2: #{tpu_custom_call.1} parent=1 // loop_pre_header
      _
    $region3: #{tpu_custom_call.1} parent=1 // loop_header
      %s17 = sphi 0, %s21
      %p18 = scmp.ge.s32.totalorder %s17, 4
      %s24 = sphi 0, %s36
      %s25 = sphi 0, %s32
      %s26 = sphi 0, %s24
      %s27 = sphi 0, %s25
      %s28 = sphi 0, %s26
      %s29 = sphi 0, %s27
      %s41 = sphi 0, %s43
      %s44 = sphi 0, %s41
      %s45 = sphi 0, %s44
      %s61 = sphi 0, %s45
      %s69 = sphi 0, %s71
      %s72 = sphi 0, %s69
      %s73 = sphi 0, %s72
      %s89 = sphi 0, %s73
      %s95 = sphi 0, %s97
      %s98 = sphi 0, %s95
      %s99 = sphi 0, %s98
      %s115 = sphi 0, %s99
    $region4: #{tpu_custom_call.1} parent=1 // loop_header_branch
      %20 = sbr.rel (%p18) target = $region8
    $region5: #{tpu_custom_call.1} parent=1 // loop_body
      %s22 = ssub.s32 %s17, 1
      %s23 = ssub.s32 %s17, 2
      %s30 = sadd.s32 1, %s25
      %p31 = scmp.ge.s32.totalorder %s30, 1
      %s32 = scalar_select %p31, 0, %s30
      %s33 = sadd.s32 1, %s24
      %s34 = scalar_select %p31, %s33, %s24
      %p35 = scmp.ge.s32.totalorder %s34, 2
      %s36 = scalar_select %p35, 0, %s34
      %s37 = ssub.s32 %s24, %s36
      %s38 = ssub.s32 %s25, %s32
      %s39 = sor.u32 %s37, %s38
      %p40 = scmp.eq.s32.totalorder %s39, 0
      %s42 = sadd.s32 %s41, 1
      %s43 = scalar_select %p40, %s41, %s42
      %p46 = pneg %p40
      %p47 = scmp.eq.s32.totalorder %s17, 1
      %p48 = por %p46, %p47
      %p49 = scmp.ne.s32.totalorder %s41, %s44
      %p50 = scmp.eq.s32.totalorder %s17, 0
      %p51 = por %p49, %p50
      %p52 = scmp.ne.s32.totalorder %s41, %s44
      %p53 = scmp.eq.s32.totalorder %s22, 1
      %p54 = por %p52, %p53
      %p55 = scmp.ne.s32.totalorder %s44, %s45
      %p56 = scmp.eq.s32.totalorder %s22, 0
      %p57 = por %p55, %p56
      %p58 = scmp.ne.s32.totalorder %s44, %s45
      %p59 = scmp.eq.s32.totalorder %s23, 1
      %p60 = por %p58, %p59
      %p62 = scmp.ne.s32.totalorder %s45, %s61
      %p63 = scmp.eq.s32.totalorder %s23, 0
      %p64 = por %p62, %p63
      %s65 = ssub.s32 %s24, %s36
      %s66 = ssub.s32 %s25, %s32
      %s67 = sor.u32 %s65, %s66
      %p68 = scmp.eq.s32.totalorder %s67, 0
      %s70 = sadd.s32 %s69, 1
      %s71 = scalar_select %p68, %s69, %s70
      %p74 = pneg %p68
      %p75 = scmp.eq.s32.totalorder %s17, 1
      %p76 = por %p74, %p75
      %p77 = scmp.ne.s32.totalorder %s69, %s72
      %p78 = scmp.eq.s32.totalorder %s17, 0
      %p79 = por %p77, %p78
      %p80 = scmp.ne.s32.totalorder %s69, %s72
      %p81 = scmp.eq.s32.totalorder %s22, 1
      %p82 = por %p80, %p81
      %p83 = scmp.ne.s32.totalorder %s72, %s73
      %p84 = scmp.eq.s32.totalorder %s22, 0
      %p85 = por %p83, %p84
      %p86 = scmp.ne.s32.totalorder %s72, %s73
      %p87 = scmp.eq.s32.totalorder %s23, 1
      %p88 = por %p86, %p87
      %p90 = scmp.ne.s32.totalorder %s73, %s89
      %p91 = scmp.eq.s32.totalorder %s23, 0
      %p92 = por %p90, %p91
      %s93 = ssub.s32 %s24, %s36
      %p94 = scmp.eq.s32.totalorder %s93, 0
      %s96 = sadd.s32 %s95, 1
      %s97 = scalar_select %p94, %s95, %s96
      %p100 = pneg %p94
      %p101 = scmp.eq.s32.totalorder %s17, 1
      %p102 = por %p100, %p101
      %p103 = scmp.ne.s32.totalorder %s95, %s98
      %p104 = scmp.eq.s32.totalorder %s17, 0
      %p105 = por %p103, %p104
      %p106 = scmp.ne.s32.totalorder %s95, %s98
      %p107 = scmp.eq.s32.totalorder %s22, 1
      %p108 = por %p106, %p107
      %p109 = scmp.ne.s32.totalorder %s98, %s99
      %p110 = scmp.eq.s32.totalorder %s22, 0
      %p111 = por %p109, %p110
      %p112 = scmp.ne.s32.totalorder %s98, %s99
      %p113 = scmp.eq.s32.totalorder %s23, 1
      %p114 = por %p112, %p113
      %p116 = scmp.ne.s32.totalorder %s99, %s115
      %p117 = scmp.eq.s32.totalorder %s23, 0
      %p118 = por %p116, %p117
      %p119 = scmp.le.s32.totalorder 1, %s17
      %p120 = scmp.lt.s32.totalorder %s17, 3
      %p121 = pnand %p119, %p120
      %p122 = pneg %p121
      // Predicated region
      $region9: #{tpu_custom_call.1} parent=5 // pred_check
        _
      $region10: #{tpu_custom_call.1} parent=5 // pred_check_branch
        %124 = sbr.rel (%p121) target = $region12
      $region11: #{tpu_custom_call.1} parent=5 // pred_region
        %s125 = ssub.s32 %s17, 1
      $region12: #{tpu_custom_call.1} parent=5 // pred_fallthru
        _
      %p126 = scmp.lt.s32.totalorder %s17, 2
      // Predicated region
      $region13: #{tpu_custom_call.1} parent=5 // pred_check
        %p127 = pneg %p126
      $region14: #{tpu_custom_call.1} parent=5 // pred_check_branch
        %129 = sbr.rel (%p127) target = $region16
      $region15: #{tpu_custom_call.1} parent=5 // pred_region
        // Predicated region
        $region17: #{tpu_custom_call.1} parent=15 // pred_check
          %p130 = pneg %p51
        $region18: #{tpu_custom_call.1} parent=15 // pred_check_branch
          %132 = sbr.rel (%p130) target = $region20
        $region19: #{tpu_custom_call.1} parent=15 // pred_region
          %s133 = sand.u32 %s41, 1
          %s134 = scalar_lea.sflag [#allocation3], %s133
          %s135 = sand.u32 %s41, 1
          %s136 = smul.addr %s135, 32
          %s137 = scalar_lea.vmem [#allocation2], %s136
          %s138 = smul.u32 4, %s24
          %s140 = ssub.s32 512, 512
          %141 = vsyncadd %s134, %s140
          %s142 = sadd.s32 %s25, %s138
          %s143 = smul.addr %s142, 128
          %s144 = scalar_lea.hbm %s0, %s143
          %s145 = sshll.u32 %s137, 4
          %s146 = int_to_ptr.vmem [resolvable:$true] %s145
          %151 = dma.hbm_to_vmem [thread:$0]  %s144, 512, %s146, %s134, 128, 128, 8
        $region20: #{tpu_custom_call.1} parent=15 // pred_fallthru
          _
        // Predicated region
        $region21: #{tpu_custom_call.1} parent=15 // pred_check
          %p152 = pneg %p79
        $region22: #{tpu_custom_call.1} parent=15 // pred_check_branch
          %154 = sbr.rel (%p152) target = $region24
        $region23: #{tpu_custom_call.1} parent=15 // pred_region
          %s155 = sand.u32 %s69, 1
          %s156 = scalar_lea.sflag [#allocation6], %s155
          %s157 = sand.u32 %s69, 1
          %s158 = smul.addr %s157, 32
          %s159 = scalar_lea.vmem [#allocation5], %s158
          %s160 = smul.u32 4, %s24
          %s162 = ssub.s32 512, 512
          %163 = vsyncadd %s156, %s162
          %s164 = sadd.s32 %s25, %s160
          %s165 = smul.addr %s164, 128
          %s166 = scalar_lea.hbm %s1, %s165
          %s167 = sshll.u32 %s159, 4
          %s168 = int_to_ptr.vmem [resolvable:$true] %s167
          %173 = dma.hbm_to_vmem [thread:$0]  %s166, 512, %s168, %s156, 128, 128, 8
        $region24: #{tpu_custom_call.1} parent=15 // pred_fallthru
          _
      $region16: #{tpu_custom_call.1} parent=5 // pred_fallthru
        _
      %p174 = scmp.le.s32.totalorder 1, %s17
      %p175 = scmp.lt.s32.totalorder %s17, 3
      %p176 = pnand %p174, %p175
      %p177 = pneg %p176
      // Predicated region
      $region25: #{tpu_custom_call.1} parent=5 // pred_check
        _
      $region26: #{tpu_custom_call.1} parent=5 // pred_check_branch
        %179 = sbr.rel (%p176) target = $region28
      $region27: #{tpu_custom_call.1} parent=5 // pred_region
        %s180 = ssub.s32 %s17, 1
        %s181 = sand.u32 %s44, 1
        %s182 = scalar_lea.sflag [#allocation3], %s181
        %s183 = sand.u32 %s44, 1
        %s184 = smul.addr %s183, 32
        %s185 = scalar_lea.vmem [#allocation2], %s184
        // Predicated region
        $region29: #{tpu_custom_call.1} parent=27 // pred_check
          %p186 = pneg %p57
        $region30: #{tpu_custom_call.1} parent=27 // pred_check_branch
          %188 = sbr.rel (%p186) target = $region32
        $region31: #{tpu_custom_call.1} parent=27 // pred_region
          %189 = dma.done %s182, 512
        $region32: #{tpu_custom_call.1} parent=27 // pred_fallthru
          _
        %s190 = sand.u32 %s72, 1
        %s191 = scalar_lea.sflag [#allocation6], %s190
        %s192 = sand.u32 %s72, 1
        %s193 = smul.addr %s192, 32
        %s194 = scalar_lea.vmem [#allocation5], %s193
        // Predicated region
        $region33: #{tpu_custom_call.1} parent=27 // pred_check
          %p195 = pneg %p85
        $region34: #{tpu_custom_call.1} parent=27 // pred_check_branch
          %197 = sbr.rel (%p195) target = $region36
        $region35: #{tpu_custom_call.1} parent=27 // pred_region
          %198 = dma.done %s191, 512
        $region36: #{tpu_custom_call.1} parent=27 // pred_fallthru
          _
        %s199 = sand.u32 %s44, 1
        %s200 = scalar_lea.sflag [#allocation3], %s199
        %s201 = sand.u32 %s44, 1
        %s202 = smul.addr %s201, 32
        %s203 = scalar_lea.vmem [#allocation2], %s202
        %p204 = pneg %p57
        %p205 = pneg %p54
        %s206 = sand.u32 %s72, 1
        %s207 = scalar_lea.sflag [#allocation6], %s206
        %s208 = sand.u32 %s72, 1
        %s209 = smul.addr %s208, 32
        %s210 = scalar_lea.vmem [#allocation5], %s209
        %p211 = pneg %p85
        %p212 = pneg %p82
        %p213 = pneg %p111
        %p214 = pneg %p108
        %s215 = sand.u32 %s98, 1
        %s216 = scalar_lea.sflag [#allocation4], %s215
        %s217 = sand.u32 %s98, 1
        %s218 = smul.addr %s217, 8
        %s219 = scalar_lea.vmem [#allocation7], %s218
        %s220 = smul.u32 4, %s26
        %s221 = smul.u32 4, %s26
        %p222 = scmp.eq.s32.totalorder %s27, 0
        // Predicated region
        $region37: #{tpu_custom_call.1} parent=27 // pred_check
          %p223 = pneg %p222
        $region38: #{tpu_custom_call.1} parent=27 // pred_check_branch
          %225 = sbr.rel (%p223) target = $region40
        $region39: #{tpu_custom_call.1} parent=27 // pred_region
          %226 = vst [vmem:[%s219] sm:$0xff] 0.0
        $region40: #{tpu_custom_call.1} parent=27 // pred_fallthru
          _
        %v227 = vld [vmem:[%s185] sm:$0xff]
        %v228 = vld [vmem:[%s185 + $0x8] sm:$0xff]
        %v229 = vld [vmem:[%s185 + $0x10] sm:$0xff]
        %v230 = vld [vmem:[%s185 + $0x18] sm:$0xff]
        %v231 = vld [vmem:[%s194] sm:$0xff]
        %v232 = vld [vmem:[%s194 + $0x8] sm:$0xff]
        %v233 = vld [vmem:[%s194 + $0x10] sm:$0xff]
        %v234 = vld [vmem:[%s194 + $0x18] sm:$0xff]
        %v235 = vadd.f32 %v227, %v231
        %v236 = vadd.f32 %v228, %v232
        %v237 = vadd.f32 %v229, %v233
        %v238 = vadd.f32 %v230, %v234
        %v239 = vmax.f32 %v227, 1.1754944e-38
        %v240 = vmax.f32 %v228, 1.1754944e-38
        %v241 = vmax.f32 %v229, 1.1754944e-38
        %v242 = vmax.f32 %v230, 1.1754944e-38
        %v243 = vlog2.pop %v239
        %v244 = vmul.f32 %v243, 0.6931472
        %v245 = vlog2.pop %v240
        %v246 = vmul.f32 %v245, 0.6931472
        %v247 = vlog2.pop %v241
        %v248 = vmul.f32 %v247, 0.6931472
        %v249 = vlog2.pop %v242
        %v250 = vmul.f32 %v249, 0.6931472
        %v251 = vmul.f32 %v227, %v244
        %v252 = vmul.f32 %v228, %v246
        %v253 = vmul.f32 %v229, %v248
        %v254 = vmul.f32 %v230, %v250
        %v255 = vmax.f32 %v231, 1.1754944e-38
        %v256 = vmax.f32 %v232, 1.1754944e-38
        %v257 = vmax.f32 %v233, 1.1754944e-38
        %v258 = vmax.f32 %v234, 1.1754944e-38
        %v259 = vlog2.pop %v255
        %v260 = vmul.f32 %v259, 0.6931472
        %v261 = vlog2.pop %v256
        %v262 = vmul.f32 %v261, 0.6931472
        %v263 = vlog2.pop %v257
        %v264 = vmul.f32 %v263, 0.6931472
        %v265 = vlog2.pop %v258
        %v266 = vmul.f32 %v265, 0.6931472
        %v267 = vmul.f32 %v231, %v260
        %v268 = vmul.f32 %v232, %v262
        %v269 = vmul.f32 %v233, %v264
        %v270 = vmul.f32 %v234, %v266
        %v271 = vadd.f32 %v251, %v267
        %v272 = vadd.f32 %v252, %v268
        %v273 = vadd.f32 %v253, %v269
        %v274 = vadd.f32 %v254, %v270
        %v275 = vmax.f32 %v235, 1.1754944e-38
        %v276 = vmax.f32 %v236, 1.1754944e-38
        %v277 = vmax.f32 %v237, 1.1754944e-38
        %v278 = vmax.f32 %v238, 1.1754944e-38
        %v279 = vlog2.pop %v275
        %v280 = vmul.f32 %v279, 0.6931472
        %v281 = vlog2.pop %v276
        %v282 = vmul.f32 %v281, 0.6931472
        %v283 = vlog2.pop %v277
        %v284 = vmul.f32 %v283, 0.6931472
        %v285 = vlog2.pop %v278
        %v286 = vmul.f32 %v285, 0.6931472
        %v287 = vadd.f32 %v280, -0.6931472
        %v288 = vadd.f32 %v282, -0.6931472
        %v289 = vadd.f32 %v284, -0.6931472
        %v290 = vadd.f32 %v286, -0.6931472
        %v291 = vmul.f32 %v235, %v287
        %v292 = vmul.f32 %v236, %v288
        %v293 = vmul.f32 %v237, %v289
        %v294 = vmul.f32 %v238, %v290
        %v295 = vsub.f32 %v271, %v291
        %v296 = vsub.f32 %v272, %v292
        %v297 = vsub.f32 %v273, %v293
        %v298 = vsub.f32 %v274, %v294
        %v299 = vadd.f32 %v295, %v296
        %v300 = vadd.f32 %v299, %v297
        %v301 = vadd.f32 %v300, %v298
        %v302 = vld [vmem:[%s219] sm:$0xff]
        %v303 = vadd.f32 %v302, %v301
        %304 = vst [vmem:[%s219] sm:$0xff] %v303
        %s305 = sand.u32 %s98, 1
        %s306 = scalar_lea.sflag [#allocation4], %s305
        %s307 = sand.u32 %s98, 1
        %s308 = smul.addr %s307, 8
        %s309 = scalar_lea.vmem [#allocation7], %s308
        // Predicated region
        $region41: #{tpu_custom_call.1} parent=27 // pred_check
          %p310 = pneg %p108
        $region42: #{tpu_custom_call.1} parent=27 // pred_check_branch
          %312 = sbr.rel (%p310) target = $region44
        $region43: #{tpu_custom_call.1} parent=27 // pred_region
          %s314 = ssub.s32 128, 128
          %315 = vsyncadd %s306, %s314
          %s316 = smul.addr %s26, 128
          %s317 = scalar_lea.hbm %s2, %s316
          %s319 = sshll.u32 %s309, 4
          %s320 = int_to_ptr.vmem [resolvable:$true] %s319
          %322 = dma.vmem_to_hbm [thread:$0]  %s320, 128, %s317, %s306
        $region44: #{tpu_custom_call.1} parent=27 // pred_fallthru
          _
      $region28: #{tpu_custom_call.1} parent=5 // pred_fallthru
        _
      %p323 = scmp.le.s32.totalorder 2, %s17
      // Predicated region
      $region45: #{tpu_custom_call.1} parent=5 // pred_check
        %p324 = pneg %p323
      $region46: #{tpu_custom_call.1} parent=5 // pred_check_branch
        %326 = sbr.rel (%p324) target = $region48
      $region47: #{tpu_custom_call.1} parent=5 // pred_region
        %s327 = ssub.s32 %s17, 2
        // Predicated region
        $region49: #{tpu_custom_call.1} parent=47 // pred_check
          %p328 = pneg %p114
        $region50: #{tpu_custom_call.1} parent=47 // pred_check_branch
          %330 = sbr.rel (%p328) target = $region52
        $region51: #{tpu_custom_call.1} parent=47 // pred_region
          %s331 = sand.u32 %s99, 1
          %s332 = scalar_lea.sflag [#allocation4], %s331
          %s333 = sand.u32 %s99, 1
          %s334 = smul.addr %s333, 8
          %s335 = scalar_lea.vmem [#allocation7], %s334
          %336 = dma.done %s332, 128
        $region52: #{tpu_custom_call.1} parent=47 // pred_fallthru
          _
      $region48: #{tpu_custom_call.1} parent=5 // pred_fallthru
        _
    $region6: #{tpu_custom_call.1} parent=1 // loop_footer
      %s21 = sadd.s32 1, %s17
    $region7: #{tpu_custom_call.1} parent=1 // loop_footer_branch
      %16 = sbr.rel target = $region3
    $region8: #{tpu_custom_call.1} parent=1 // loop_exit
      _
    %337 = vsyncpa [#allocation3], 1
    %s338 = scalar_lea.sflag [#allocation3], 1
    %339 = vsyncpa %s338, 1
    %340 = vsyncpa [#allocation6], 1
    %s341 = scalar_lea.sflag [#allocation6], 1
    %342 = vsyncpa %s341, 1
    %343 = vsyncpa [#allocation4], 1
    %s344 = scalar_lea.sflag [#allocation4], 1
    %345 = vsyncpa %s344, 1

</llo_original>
